<compile_context>
chip_gen: v7x
topology: tpu7x:2x2x1
jax: 0.10.0
libtpu: 0.0.40
codegen_flags: <defaults>
</compile_context>

<pallas_src>
import functools

import numpy as np
import jax
import jax.numpy as jnp
from jax.experimental import pallas as pl
from jax.experimental.pallas import tpu as pltpu


_VMEM = pl.BlockSpec(memory_space=pltpu.MemorySpace.VMEM)


# ----------------------- pltpu.roll direction probe -------------------------

_ROLL_TO_HIGHER = None   # True <=> pltpu.roll(x, s, ax)[i] == x[i - s]  (jnp.roll)


def _probe_roll_kernel(x_ref, o_ref):
    o_ref[...] = pltpu.roll(x_ref[...], 1, 1)


def _roll_to_higher_indices():
    """Probe (once) which way pltpu.roll rotates on this backend."""
    global _ROLL_TO_HIGHER
    if _ROLL_TO_HIGHER is None:
        lanes = jnp.broadcast_to(jnp.arange(128, dtype=jnp.float32), (8, 128))
        y = pl.pallas_call(
            _probe_roll_kernel,
            out_shape=jax.ShapeDtypeStruct((8, 128), jnp.float32),
            in_specs=[_VMEM],
            out_specs=_VMEM,
        )(lanes)
        _ROLL_TO_HIGHER = bool(y[0, 0] == 127.0)
    return _ROLL_TO_HIGHER


# ------------------------------ fused kernel --------------------------------

def _up_fused_kernel(x1_ref, x2_ref, up_ref, masks_ref,
                     w1_ref, g1_ref, beta1_ref, w2_ref, g2_ref, beta2_ref,
                     o_ref, *, img_w, roll_to_higher):
    # x1_ref   : (C1, N*h*w)        x1 in (C1, N, h, w) order, spatial on lanes
    # x2_ref   : (C2, N*H*W)        x2 in (C2, N, H, W) order, spatial on lanes
    # up_ref   : (N*h*w, N*H*W)     block-diag kron(A_h, A_w)^T, F.pad folded in
    # masks_ref: (9, N*H*W)         0/1 conv-tap boundary masks
    # w1_ref   : (Cmid, 9*(C1+C2)),  w2_ref : (Cout, 9*Cmid)   tap-major
    # g*/beta* : (C, 1)             BatchNorm affine parameters
    # o_ref    : (Cout, N*H*W)      lane-dense output
    S = x2_ref.shape[1]
    inv_s = 1.0 / S

    # ---- 1. bilinear 2x upsample (align_corners=True) + F.pad: one matmul ---
    x1u = jnp.dot(x1_ref[...], up_ref[...],
                  preferred_element_type=jnp.float32)             # (C1, S)

    # ---- 2. channel concat: torch.cat([x2, x1_up], dim=1) -------------------
    xin = jnp.concatenate([x2_ref[...], x1u], axis=0)             # (C1+C2, S)

    masks = masks_ref[...]                                        # (9, S)

    # ---- 3. Conv3x3(pad=1) -> BatchNorm2d(training stats) -> ReLU -----------
    def conv3x3_bn_relu(x, w_mat, gamma, beta):
        cols = []
        t = 0
        for dy in (-1, 0, 1):
            for dx in (-1, 0, 1):
                off = dy * img_w + dx        # want shifted[s] = x[s + off]
                if off == 0:
                    cols.append(x)           # centre tap: mask is all ones
                else:
                    shift = (-off) % S if roll_to_higher else off % S
                    shifted = pltpu.roll(x, shift, 1)             # XLU rotate
                    cols.append(shifted * masks[t:t + 1, :])
                t += 1
        im2col = jnp.concatenate(cols, axis=0)                    # (9*Cin, S)
        acc = jnp.dot(w_mat, im2col,
                      preferred_element_type=jnp.float32)         # (Cout, S)
        # Conv bias omitted: it cancels exactly in the BN mean subtraction.
        # BatchNorm2d training mode: biased batch stats over (N, H, W), eps=1e-5.
        mean = jnp.sum(acc, axis=1, keepdims=True) * inv_s
        ex2 = jnp.sum(acc * acc, axis=1, keepdims=True) * inv_s
        var = ex2 - mean * mean
        scale = gamma * jax.lax.rsqrt(var + 1e-5)                 # (C, 1)
        shift_ = beta - mean * scale                              # (C, 1)
        return jnp.maximum(acc * scale + shift_, 0.0)             # fused BN+ReLU

    mid = conv3x3_bn_relu(xin, w1_ref[...], g1_ref[...], beta1_ref[...])
    o_ref[...] = conv3x3_bn_relu(mid, w2_ref[...], g2_ref[...], beta2_ref[...])


# ----------------------------- host-side helpers ----------------------------

def _interp_matrix(n_in, n_out):
    """Bilinear align_corners=True interpolation weights, shape (n_out, n_in)."""
    if n_in == 1:
        return np.ones((n_out, 1), np.float32)
    a = np.zeros((n_out, n_in), np.float64)
    src = np.arange(n_out, dtype=np.float64) * (n_in - 1) / (n_out - 1)
    lo = np.clip(np.floor(src).astype(np.int64), 0, n_in - 2)
    t = src - lo
    a[np.arange(n_out), lo] += 1.0 - t
    a[np.arange(n_out), lo + 1] += t
    return a.astype(np.float32)


def _padded_interp_matrix(n_in, n_up, n_out, lo_pad):
    """(n_out, n_in) matrix: rows [lo_pad, lo_pad+n_up) are the 2x bilinear
    weights, other rows are zero.  This folds F.pad of the upsampled x1 to
    x2's spatial size directly into the upsample."""
    a = np.zeros((n_out, n_in), np.float32)
    a[lo_pad:lo_pad + n_up] = _interp_matrix(n_in, n_up)
    return a


def _tap_masks(n, hgt, wid):
    """(9, n*hgt*wid) 0/1 masks; tap t=(dy+1)*3+(dx+1) valid where (y+dy, x+dx)
    stays inside the image (emulates the conv's zero padding on the rolled,
    flattened spatial axis)."""
    ys, xs = np.meshgrid(np.arange(hgt), np.arange(wid), indexing="ij")
    m = np.zeros((9, n, hgt, wid), np.float32)
    t = 0
    for dy in (-1, 0, 1):
        for dx in (-1, 0, 1):
            ok = ((ys + dy >= 0) & (ys + dy < hgt) &
                  (xs + dx >= 0) & (xs + dx < wid)).astype(np.float32)
            m[t] = ok[None]
            t += 1
    return m.reshape(9, n * hgt * wid)


@functools.lru_cache(maxsize=None)
def _host_constants(n, h, w, hgt, wid):
    """Upsample+pad matmul operand and conv boundary masks (cached per shape)."""
    diff_y = hgt - 2 * h
    diff_x = wid - 2 * w
    assert diff_y >= 0 and diff_x >= 0
    a_h = _padded_interp_matrix(h, 2 * h, hgt, diff_y // 2)        # (H, h)
    a_w = _padded_interp_matrix(w, 2 * w, wid, diff_x // 2)        # (W, w)
    a_full_t = np.kron(a_h, a_w).T.astype(np.float32)              # (h*w, H*W)
    up = np.zeros((n * h * w, n * hgt * wid), np.float32)          # block-diag
    for i in range(n):
        up[i * h * w:(i + 1) * h * w,
           i * hgt * wid:(i + 1) * hgt * wid] = a_full_t
    masks = _tap_masks(n, hgt, wid)                                # (9, S)
    return up, masks


# --------------------------------- wrapper ----------------------------------

def up_forward(params, x1_nchw, x2_nchw, dropout=False):
    """Pallas implementation of Up(bilinear=True).forward(x1, x2, dropout)."""
    n, c1, h, w = x1_nchw.shape
    n2, c2, hgt, wid = x2_nchw.shape
    assert n == n2
    s = n * hgt * wid
    cin_total = params["w1"].shape[2]
    cmid = params["w1"].shape[3]
    cout = params["w2"].shape[3]
    assert cin_total == c1 + c2

    if dropout:
        # TODO(synk): training-mode nn.Dropout(0.5) depends on torch's RNG
        # stream; not replicated here — call with dropout=False.
        pass

    up_np, masks_np = _host_constants(n, h, w, hgt, wid)

    # Layout plumbing (tiny XLA copies): channels-major, spatial flattened.
    x1_2d = jnp.transpose(x1_nchw, (1, 0, 2, 3)).reshape(c1, n * h * w)
    x2_2d = jnp.transpose(x2_nchw, (1, 0, 2, 3)).reshape(c2, s)

    # Conv weights HWIO (3, 3, Cin, Cout) -> (Cout, 9*Cin), tap-major.
    w1_mat = jnp.transpose(params["w1"], (3, 0, 1, 2)).reshape(cmid, 9 * cin_total)
    w2_mat = jnp.transpose(params["w2"], (3, 0, 1, 2)).reshape(cout, 9 * cmid)

    kernel = functools.partial(_up_fused_kernel,
                               img_w=wid,
                               roll_to_higher=_roll_to_higher_indices())
    out = pl.pallas_call(
        kernel,
        out_shape=jax.ShapeDtypeStruct((cout, s), jnp.float32),
        in_specs=[_VMEM] * 10,
        out_specs=_VMEM,
    )(x1_2d.astype(jnp.float32), x2_2d.astype(jnp.float32),
      jnp.asarray(up_np), jnp.asarray(masks_np),
      w1_mat.astype(jnp.float32),
      params["g1"].reshape(cmid, 1).astype(jnp.float32),
      params["beta1"].reshape(cmid, 1).astype(jnp.float32),
      w2_mat.astype(jnp.float32),
      params["g2"].reshape(cout, 1).astype(jnp.float32),
      params["beta2"].reshape(cout, 1).astype(jnp.float32))

    # (Cout, N*H*W) lane-dense kernel output -> NCHW.
    return jnp.transpose(out.reshape(cout, n, hgt, wid), (1, 0, 2, 3))


# ----------------------------------- main ------------------------------------

if __name__ == "__main__":
    # Up(in_channels=8, out_channels=4, bilinear=True):
    #   x1: (2, 4, 8, 8)  -> upsampled to 16x16
    #   x2: (2, 4, 16, 16)
    #   concat -> 8 channels, DoubleConv(8, 4, mid_channels=4)
    in_ch, out_ch = 8, 4
    mid_ch = in_ch // 2

    key = jax.random.PRNGKey(0)
    ks = jax.random.split(key, 8)

    x1 = jax.random.normal(ks[0], (2, 4, 8, 8), jnp.float32)
    x2 = jax.random.normal(ks[1], (2, 4, 16, 16), jnp.float32)

    params = {
        # torch conv weight (Cout, Cin, 3, 3) stored here as HWIO (3, 3, Cin, Cout).
        # Conv biases omitted: a bias added before training-mode BatchNorm
        # cancels exactly in the mean subtraction.
        "w1": 0.1 * jax.random.normal(ks[2], (3, 3, in_ch, mid_ch), jnp.float32),
        "g1": 1.0 + 0.1 * jax.random.normal(ks[3], (mid_ch,), jnp.float32),
        "beta1": 0.1 * jax.random.normal(ks[4], (mid_ch,), jnp.float32),
        "w2": 0.1 * jax.random.normal(ks[5], (3, 3, mid_ch, out_ch), jnp.float32),
        "g2": 1.0 + 0.1 * jax.random.normal(ks[6], (out_ch,), jnp.float32),
        "beta2": 0.1 * jax.random.normal(ks[7], (out_ch,), jnp.float32),
    }

    out = up_forward(params, x1, x2, dropout=False)
    out = jax.block_until_ready(out)
    assert out.shape == (2, out_ch, 16, 16), out.shape
    assert bool(jnp.all(jnp.isfinite(out)))
    print("KERNEL_OK")
</pallas_src>

<mosaic_0001>
module attributes {stable_mosaic.version = 11 : i64} {
  func.func @_probe_roll_kernel(%arg0: memref<8x128xf32, #tpu.memory_space<vmem>>, %arg1: memref<8x128xf32, #tpu.memory_space<vmem>>) attributes {dimension_semantics = [], scalar_prefetch = 0 : i64, scratch_operands = 0 : i64, tpu.core_type = #tpu.core_type<tc>} {
    %c0 = arith.constant 0 : index
    %c0_0 = arith.constant 0 : index
    %0 = vector.load %arg0[%c0, %c0_0] : memref<8x128xf32, #tpu.memory_space<vmem>>, vector<8x128xf32>
    %c1_i32 = arith.constant 1 : i32
    %1 = tpu.dynamic_rotate %0 by %c1_i32 dim 1 : vector<8x128xf32>, i32 -> vector<8x128xf32>
    %c0_1 = arith.constant 0 : index
    %c0_2 = arith.constant 0 : index
    %2 = vector.load %arg1[%c0_1, %c0_2] : memref<8x128xf32, #tpu.memory_space<vmem>>, vector<8x128xf32>
    tpu.vector_store %arg1[%c0_1, %c0_2], %1 {strides = array<i32>} : memref<8x128xf32, #tpu.memory_space<vmem>>, vector<8x128xf32>,
    return
  }
}

</mosaic_0001>

<llo_original>
// kernel: tpu_custom_call.1
$region0: #{tpu_custom_call.1}
  #allocation0 [shape = 'u32[]', space=smem, size = 0x4, offset = 0x4, fixed_abs, tag = 'smem constant byte address 0x4 - core index']
  #allocation1 [shape = 'u32[144,128]{1,0:T(1,128)}', space=vmem, size = 0x12000, scoped, tag = 'internal scratch']
  %s0 = inlined_call_operand.hbm [shape: f32[8,128], index: 0, kind: input, shape index: {}]
  %s1 = inlined_call_operand.hbm [shape: f32[8,128], index: 1, kind: output, shape index: {}]
  %s2 = sld [smem:[#allocation0]]
  $region18: #{tpu_custom_call.1} parent=0
    _
  %s4 = ssub.s32 1, %s2
  %s5 = scalar_select 0, %s4, %s2
  $region1: #{tpu_custom_call.1} parent=0
    #allocation2 [shape = 'u8[4096]{0}', space=vmem, size = 0x1000, scoped, tag = 'input window, operand 0, single buffered']
    #allocation3 [shape = 's32[1]{0}', space=sflag, size = 0x4, scoped, tag = 'scoped memory for tpu_custom_call.1']
    #allocation4 [shape = 's32[1]{0}', space=sflag, size = 0x4, scoped, tag = 'scoped memory for tpu_custom_call.1']
    #allocation5 [shape = 'u8[4096]{0}', space=vmem, size = 0x1000, scoped, tag = 'output window, operand 0, single buffered']
    %6 = vsyncpa [#allocation3], 0
    %7 = vsyncpa [#allocation4], 0
    // Predicated region
    $region2: #{tpu_custom_call.1} parent=1 // pred_check
      _
    $region3: #{tpu_custom_call.1} parent=1 // pred_check_branch
      %9 = sbr.rel (0) target = $region5
    $region4: #{tpu_custom_call.1} parent=1 // pred_region
      %s11 = ssub.s32 128, 128
      %12 = vsyncadd [#allocation3], %s11
      %s14 = sshll.u32 [#allocation2], 4
      %s15 = int_to_ptr.vmem [resolvable:$true] %s14
      %17 = dma.hbm_to_vmem [thread:$0]  %s0, 128, %s15, [#allocation3]
    $region5: #{tpu_custom_call.1} parent=1 // pred_fallthru
      _
    // Predicated region
    $region6: #{tpu_custom_call.1} parent=1 // pred_check
      _
    $region7: #{tpu_custom_call.1} parent=1 // pred_check_branch
      %19 = sbr.rel (0) target = $region9
    $region8: #{tpu_custom_call.1} parent=1 // pred_region
      %20 = dma.done [#allocation3], 128
    $region9: #{tpu_custom_call.1} parent=1 // pred_fallthru
      _
    %v21 = vld [vmem:[#allocation2] sm:$0xff]
    %22 = vrot.lane.b32.xlu0 %v21, 1
    %v23 = vpop.permute.xlu0 %22
    %24 = vst [vmem:[#allocation5] sm:$0xff] %v23
    // Predicated region
    $region10: #{tpu_custom_call.1} parent=1 // pred_check
      _
    $region11: #{tpu_custom_call.1} parent=1 // pred_check_branch
      %26 = sbr.rel (0) target = $region13
    $region12: #{tpu_custom_call.1} parent=1 // pred_region
      %s28 = ssub.s32 128, 128
      %29 = vsyncadd [#allocation4], %s28
      %s31 = sshll.u32 [#allocation5], 4
      %s32 = int_to_ptr.vmem [resolvable:$true] %s31
      %34 = dma.vmem_to_hbm [thread:$0]  %s32, 128, %s1, [#allocation4]
    $region13: #{tpu_custom_call.1} parent=1 // pred_fallthru
      _
    // Predicated region
    $region14: #{tpu_custom_call.1} parent=1 // pred_check
      _
    $region15: #{tpu_custom_call.1} parent=1 // pred_check_branch
      %36 = sbr.rel (0) target = $region17
    $region16: #{tpu_custom_call.1} parent=1 // pred_region
      %37 = dma.done [#allocation4], 128
    $region17: #{tpu_custom_call.1} parent=1 // pred_fallthru
      _
    %38 = vsyncpa [#allocation3], 1
    %39 = vsyncpa [#allocation4], 1

</llo_original>
